<compile_context>
chip_gen: v7x
topology: tpu7x:2x2x1
jax: 0.10.0
libtpu: 0.0.40
codegen_flags: <defaults>
</compile_context>

<pallas_src>
import functools

import jax
import jax.numpy as jnp
from jax.experimental import pallas as pl
from jax.experimental.pallas import tpu as pltpu


def _round_up(x, m):
    return ((x + m - 1) // m) * m


def _default_tile_n():
    """Generation-aware batch tile (bigger tiles amortize ~0.35us/grid-step,
    but must respect per-generation VMEM: v5e 16MiB scoped default,
    v6e 128MiB physical, v7x 64MiB physical)."""
    try:
        kind = jax.devices()[0].device_kind.lower()
    except Exception:
        return 512
    if "v5 lite" in kind or "v5e" in kind or "v5lite" in kind:
        return 256
    if "v6" in kind:
        return 1024
    if "v7" in kind or "7x" in kind:
        return 512
    return 512


def _cgc_kernel(xh_ref, xc_ref, w_ref, b_ref, out_ref, *,
                L, d_his, split_k, cd, c_out):
    if split_k:
        # Large, 128-aligned K chunks: split-K dots, f32 accumulation.
        d_ctx = w_ref.shape[0] - d_his
        y = jnp.dot(xh_ref[...].astype(cd), w_ref[pl.ds(0, d_his), :],
                    preferred_element_type=jnp.float32)
        y = y + jnp.dot(xc_ref[...].astype(cd), w_ref[pl.ds(d_his, d_ctx), :],
                        preferred_element_type=jnp.float32)
    else:
        # Tiny / unaligned K: one merged MXU pass over in-kernel concat.
        x = jnp.concatenate([xh_ref[...], xc_ref[...]], axis=-1).astype(cd)
        y = jnp.dot(x, w_ref[...], preferred_element_type=jnp.float32)

    # Experts (+bias, ReLU).  Columns [0, 4L).
    e = jnp.maximum(y[:, :4 * L] + b_ref[...], 0.0)

    # Gate logits live in columns [4L, 4L+6): [l0_p,l0_h,l0_c, l1_p,l1_h,l1_c].
    # NOTE: when 4L is already a multiple of 128 these 6 columns cost one extra
    # 128-lane tile of weight bytes / MXU columns; accepted (documented).
    l0 = y[:, 4 * L:4 * L + 3]
    l1 = y[:, 4 * L + 3:4 * L + 6]
    # softmax over 2 logits == sigmoid(l1 - l0); EUP exp, no XLU reductions.
    g1 = 1.0 / (1.0 + jnp.exp(l0 - l1))   # task-expert weight
    g0 = 1.0 - g1                         # shared-expert weight

    e_s = e[:, 0:L]
    res = jnp.concatenate([
        g0[:, 0:1] * e_s + g1[:, 0:1] * e[:, L:2 * L],        # pred
        g0[:, 1:2] * e_s + g1[:, 1:2] * e[:, 2 * L:3 * L],    # his
        g0[:, 2:3] * e_s + g1[:, 2:3] * e[:, 3 * L:4 * L],    # ctx
    ], axis=-1)                                               # (tile, 3L)
    if c_out > 3 * L:
        # Zero-pad to the lane-dense output width -> unmasked full store.
        res = jnp.concatenate(
            [res, jnp.zeros((res.shape[0], c_out - 3 * L), jnp.float32)],
            axis=-1)
    out_ref[...] = res


def prepare_weights(params, compute_dtype=jnp.float32):
    """Build the fused weight slab ONCE (cache and reuse across calls).

    Slab columns: [shared | pred | his | ctx | gate-l0(p,h,c) | gate-l1(p,h,c)]
    -> (D, 4L+6).  Bias is (1, 4L) f32."""
    L = params["ws"].shape[1]
    g0 = jnp.concatenate([params["gp"][:, 0:1], params["gh"][:, 0:1],
                          params["gc"][:, 0:1]], axis=1)
    g1 = jnp.concatenate([params["gp"][:, 1:2], params["gh"][:, 1:2],
                          params["gc"][:, 1:2]], axis=1)
    w_all = jnp.concatenate(
        [params["ws"], params["wp"], params["wh"], params["wc"], g0, g1],
        axis=1).astype(compute_dtype)                          # (D, 4L+6)
    b_all = jnp.concatenate(
        [params["bs"], params["bp"], params["bh"], params["bc"]],
        axis=1).astype(jnp.float32)                            # (1, 4L)
    return {"w": w_all, "b": b_all, "L": L}


def cgc_2_3_forward(x_his, x_ctx, weights, *, tile_n=None):
    """weights = prepare_weights(params[, compute_dtype]).
    Returns (res_pred, res_his, res_ctx)."""
    w_all, b_all, L = weights["w"], weights["b"], weights["L"]
    cd = w_all.dtype
    n, d_his = x_his.shape
    d_ctx = x_ctx.shape[1]
    d_in = d_his + d_ctx
    c_cols = 4 * L + 6
    c_out = max(128, _round_up(3 * L, 128))   # lane-dense output slab width

    if tile_n is None:
        tile_n = _default_tile_n()

    # Sublane alignment: bf16 packs 2 rows/sublane -> 16-row tiles.
    align = 16 if cd == jnp.bfloat16 else 8
    tile = min(_round_up(tile_n, align), _round_up(n, align))
    tile = max(tile, align)
    # Use >=2 grid steps when possible so dual-TC (v7x) gets both cores busy.
    if pl.cdiv(n, tile) < 2 and _round_up(n, align) >= 2 * align:
        tile = _round_up(pl.cdiv(n, 2), align)
    grid_n = pl.cdiv(n, tile)   # ragged last block handled by Pallas (no pad)

    # Split-K only when both chunks are big & 128-aligned; else merge.
    split_k = (d_his >= 128 and d_ctx >= 128 and
               d_his % 128 == 0 and d_ctx % 128 == 0)

    # Explicit VMEM budget (double-buffered activation/output blocks +
    # weights + headroom); avoids the 16/32 MiB scoped default surprising us.
    w_bytes = d_in * c_cols * w_all.dtype.itemsize
    need = (2 * tile * d_in * 4) + 2 * w_bytes + (2 * tile * c_out * 4) \
        + 4 * c_cols * 4
    vmem_limit = int(min(64 << 20, max(32 << 20, 2 * need)))

    kernel = functools.partial(_cgc_kernel, L=L, d_his=d_his,
                               split_k=split_k, cd=cd, c_out=c_out)

    def run(single_buffer_weights):
        wkw = ({"pipeline_mode": pl.Buffered(1)}
               if single_buffer_weights else {})
        return pl.pallas_call(
            kernel,
            out_shape=jax.ShapeDtypeStruct((n, c_out), jnp.float32),
            grid=(grid_n,),
            in_specs=[
                pl.BlockSpec((tile, d_his), lambda i: (i, 0)),
                pl.BlockSpec((tile, d_ctx), lambda i: (i, 0)),
                # Constant-index weights/bias: VMEM-resident, single-buffered.
                pl.BlockSpec((d_in, c_cols), lambda i: (0, 0), **wkw),
                pl.BlockSpec((1, 4 * L), lambda i: (0, 0), **wkw),
            ],
            out_specs=pl.BlockSpec((tile, c_out), lambda i: (i, 0)),
            compiler_params=pltpu.CompilerParams(
                dimension_semantics=("parallel",),
                vmem_limit_bytes=vmem_limit),
        )(x_his, x_ctx, w_all, b_all)

    try:
        out = run(True)
    except Exception:
        # pipeline_mode / Buffered(1) unsupported on this jax: default buffers.
        out = run(False)

    return out[:, 0:L], out[:, L:2 * L], out[:, 2 * L:3 * L]


def init_params(key, d_input, d_latent):
    """Deterministic synthetic init (shapes follow the PyTorch module)."""
    ks = jax.random.split(key, 11)

    def lin_w(k, d_in, d_out):
        # PyTorch Linear weight is (out, in); we store the transpose (in, out).
        w = jax.random.normal(k, (d_out, d_in), jnp.float32) * 0.1
        return w.T

    def lin_b(k, d_out):
        return jax.random.normal(k, (1, d_out), jnp.float32) * 0.1

    return {
        "ws": lin_w(ks[0], d_input, d_latent), "bs": lin_b(ks[1], d_latent),
        "wp": lin_w(ks[2], d_input, d_latent), "bp": lin_b(ks[3], d_latent),
        "wh": lin_w(ks[4], d_input, d_latent), "bh": lin_b(ks[5], d_latent),
        "wc": lin_w(ks[6], d_input, d_latent), "bc": lin_b(ks[7], d_latent),
        "gp": lin_w(ks[8], d_input, 2),
        "gh": lin_w(ks[9], d_input, 2),
        "gc": lin_w(ks[10], d_input, 2),
    }


def _reference(x_his, x_ctx, p):
    x = jnp.concatenate([x_his, x_ctx], axis=-1)
    relu = lambda v: jnp.maximum(v, 0.0)
    e_s = relu(x @ p["ws"] + p["bs"])
    e_p = relu(x @ p["wp"] + p["bp"])
    e_h = relu(x @ p["wh"] + p["bh"])
    e_c = relu(x @ p["wc"] + p["bc"])
    sm = lambda v: jax.nn.softmax(v, axis=-1)
    g_p, g_h, g_c = sm(x @ p["gp"]), sm(x @ p["gh"]), sm(x @ p["gc"])
    rp = g_p[:, 0:1] * e_s + g_p[:, 1:2] * e_p
    rh = g_h[:, 0:1] * e_s + g_h[:, 1:2] * e_h
    rc = g_c[:, 0:1] * e_s + g_c[:, 1:2] * e_c
    return rp, rh, rc


if __name__ == "__main__":
    key = jax.random.PRNGKey(0)
    k_his, k_ctx, k_par, k_his2, k_ctx2 = jax.random.split(key, 5)

    N, D_HIS, D_CTX, D_LATENT = 8, 16, 16, 32
    D_INPUT = D_HIS + D_CTX

    params = init_params(k_par, D_INPUT, D_LATENT)
    w_f32 = prepare_weights(params)             # weight slab built/cached once

    # Small single-tile case (matches the module's toy sizes).
    x_his = jax.random.normal(k_his, (N, D_HIS), jnp.float32)
    x_ctx = jax.random.normal(k_ctx, (N, D_CTX), jnp.float32)
    res = cgc_2_3_forward(x_his, x_ctx, w_f32)
    jax.block_until_ready(res)
    ref = _reference(x_his, x_ctx, params)
    for r, rr in zip(res, ref):
        assert jnp.allclose(r, rr, atol=1e-5, rtol=1e-5)

    # Multi-tile + ragged (non-multiple-of-8) batch: exercises cdiv grid,
    # no wrapper-side padding of the activations.
    N2 = 300
    xh2 = jax.random.normal(k_his2, (N2, D_HIS), jnp.float32)
    xc2 = jax.random.normal(k_ctx2, (N2, D_CTX), jnp.float32)
    res2 = cgc_2_3_forward(xh2, xc2, w_f32, tile_n=128)
    jax.block_until_ready(res2)
    ref2 = _reference(xh2, xc2, params)
    for r, rr in zip(res2, ref2):
        assert jnp.allclose(r, rr, atol=1e-5, rtol=1e-5)

    # Default (generation-aware) tile: exercises the >=2-grid-step split path.
    res3 = cgc_2_3_forward(xh2, xc2, w_f32)
    jax.block_until_ready(res3)
    for r, rr in zip(res3, ref2):
        assert jnp.allclose(r, rr, atol=1e-5, rtol=1e-5)

    # bf16 MXU-input path (all generations), f32 accumulation + f32 gating.
    w_bf16 = prepare_weights(params, compute_dtype=jnp.bfloat16)
    res_bf = cgc_2_3_forward(xh2, xc2, w_bf16, tile_n=128)
    jax.block_until_ready(res_bf)
    for r, rr in zip(res_bf, ref2):
        assert jnp.allclose(r, rr, atol=5e-2, rtol=5e-2)

    print("KERNEL_OK")
</pallas_src>

<mosaic_0001>
module attributes {stable_mosaic.version = 11 : i64} {
  func.func @_cgc_kernel(%arg0: i32, %arg1: memref<8x16xf32, #tpu.memory_space<vmem>>, %arg2: memref<8x16xf32, #tpu.memory_space<vmem>>, %arg3: memref<32x134xf32, #tpu.memory_space<vmem>>, %arg4: memref<1x128xf32, #tpu.memory_space<vmem>>, %arg5: memref<8x128xf32, #tpu.memory_space<vmem>>) attributes {dimension_semantics = [#tpu.dimension_semantics<parallel>], iteration_bounds = array<i64: 1>, scalar_prefetch = 0 : i64, scratch_operands = 0 : i64, tpu.core_type = #tpu.core_type<tc>, window_params = [{transform_indices = @transform_0, window_bounds = array<i64: 8, 16>}, {transform_indices = @transform_1, window_bounds = array<i64: 8, 16>}, {pipeline_mode = #tpu.pipeline_mode<synchronous>, transform_indices = @transform_2, window_bounds = array<i64: 32, 134>}, {pipeline_mode = #tpu.pipeline_mode<synchronous>, transform_indices = @transform_3, window_bounds = array<i64: 1, 128>}, {transform_indices = @transform_4, window_bounds = array<i64: 8, 128>}]} {
    %c0 = arith.constant 0 : index
    %c0_0 = arith.constant 0 : index
    %0 = vector.load %arg1[%c0, %c0_0] : memref<8x16xf32, #tpu.memory_space<vmem>>, vector<8x16xf32>
    %c0_1 = arith.constant 0 : index
    %c0_2 = arith.constant 0 : index
    %1 = vector.load %arg2[%c0_1, %c0_2] : memref<8x16xf32, #tpu.memory_space<vmem>>, vector<8x16xf32>
    %2 = tpu.concatenate %0, %1 in 1 : vector<8x16xf32>, vector<8x16xf32> -> vector<8x32xf32>
    %c0_3 = arith.constant 0 : index
    %c0_4 = arith.constant 0 : index
    %3 = vector.load %arg3[%c0_3, %c0_4] : memref<32x134xf32, #tpu.memory_space<vmem>>, vector<32x134xf32>
    %cst = arith.constant dense<0.000000e+00> : vector<8x134xf32>
    %4 = tpu.matmul %2, %3, %cst {dimension_numbers = #tpu.dot_dimension_numbers<[1], [0], [0], [1], [0, 0, 1, 1], [], []>} : vector<8x32xf32>, vector<32x134xf32>, vector<8x134xf32> -> vector<8x134xf32>
    %5 = vector.extract_strided_slice %4 {offsets = [0, 0], sizes = [8, 128], strides = [1, 1]} : vector<8x134xf32> to vector<8x128xf32>
    %c0_5 = arith.constant 0 : index
    %c0_6 = arith.constant 0 : index
    %6 = vector.load %arg4[%c0_5, %c0_6] : memref<1x128xf32, #tpu.memory_space<vmem>>, vector<1x128xf32>
    %7 = vector.broadcast %6 : vector<1x128xf32> to vector<8x128xf32>
    %8 = arith.addf %5, %7 : vector<8x128xf32>
    %cst_7 = arith.constant 0.000000e+00 : f32
    %9 = vector.broadcast %cst_7 : f32 to vector<8x128xf32>
    %10 = arith.maximumf %8, %9 : vector<8x128xf32>
    %11 = vector.extract_strided_slice %4 {offsets = [0, 128], sizes = [8, 3], strides = [1, 1]} : vector<8x134xf32> to vector<8x3xf32>
    %12 = vector.extract_strided_slice %4 {offsets = [0, 131], sizes = [8, 3], strides = [1, 1]} : vector<8x134xf32> to vector<8x3xf32>
    %13 = arith.subf %11, %12 : vector<8x3xf32>
    %14 = math.exp %13 : vector<8x3xf32>
    %cst_8 = arith.constant 1.000000e+00 : f32
    %15 = vector.broadcast %cst_8 : f32 to vector<8x3xf32>
    %16 = arith.addf %15, %14 : vector<8x3xf32>
    %cst_9 = arith.constant 1.000000e+00 : f32
    %17 = vector.broadcast %cst_9 : f32 to vector<8x3xf32>
    %18 = arith.divf %17, %16 : vector<8x3xf32>
    %cst_10 = arith.constant 1.000000e+00 : f32
    %19 = vector.broadcast %cst_10 : f32 to vector<8x3xf32>
    %20 = arith.subf %19, %18 : vector<8x3xf32>
    %21 = vector.extract_strided_slice %10 {offsets = [0, 0], sizes = [8, 32], strides = [1, 1]} : vector<8x128xf32> to vector<8x32xf32>
    %22 = vector.extract_strided_slice %20 {offsets = [0, 0], sizes = [8, 1], strides = [1, 1]} : vector<8x3xf32> to vector<8x1xf32>
    %23 = vector.broadcast %22 : vector<8x1xf32> to vector<8x32xf32>
    %24 = arith.mulf %23, %21 : vector<8x32xf32>
    %25 = vector.extract_strided_slice %18 {offsets = [0, 0], sizes = [8, 1], strides = [1, 1]} : vector<8x3xf32> to vector<8x1xf32>
    %26 = vector.extract_strided_slice %10 {offsets = [0, 32], sizes = [8, 32], strides = [1, 1]} : vector<8x128xf32> to vector<8x32xf32>
    %27 = vector.broadcast %25 : vector<8x1xf32> to vector<8x32xf32>
    %28 = arith.mulf %27, %26 : vector<8x32xf32>
    %29 = arith.addf %24, %28 : vector<8x32xf32>
    %30 = vector.extract_strided_slice %20 {offsets = [0, 1], sizes = [8, 1], strides = [1, 1]} : vector<8x3xf32> to vector<8x1xf32>
    %31 = vector.broadcast %30 : vector<8x1xf32> to vector<8x32xf32>
    %32 = arith.mulf %31, %21 : vector<8x32xf32>
    %33 = vector.extract_strided_slice %18 {offsets = [0, 1], sizes = [8, 1], strides = [1, 1]} : vector<8x3xf32> to vector<8x1xf32>
    %34 = vector.extract_strided_slice %10 {offsets = [0, 64], sizes = [8, 32], strides = [1, 1]} : vector<8x128xf32> to vector<8x32xf32>
    %35 = vector.broadcast %33 : vector<8x1xf32> to vector<8x32xf32>
    %36 = arith.mulf %35, %34 : vector<8x32xf32>
    %37 = arith.addf %32, %36 : vector<8x32xf32>
    %38 = vector.extract_strided_slice %20 {offsets = [0, 2], sizes = [8, 1], strides = [1, 1]} : vector<8x3xf32> to vector<8x1xf32>
    %39 = vector.broadcast %38 : vector<8x1xf32> to vector<8x32xf32>
    %40 = arith.mulf %39, %21 : vector<8x32xf32>
    %41 = vector.extract_strided_slice %18 {offsets = [0, 2], sizes = [8, 1], strides = [1, 1]} : vector<8x3xf32> to vector<8x1xf32>
    %42 = vector.extract_strided_slice %10 {offsets = [0, 96], sizes = [8, 32], strides = [1, 1]} : vector<8x128xf32> to vector<8x32xf32>
    %43 = vector.broadcast %41 : vector<8x1xf32> to vector<8x32xf32>
    %44 = arith.mulf %43, %42 : vector<8x32xf32>
    %45 = arith.addf %40, %44 : vector<8x32xf32>
    %46 = tpu.concatenate %29, %37, %45 in 1 : vector<8x32xf32>, vector<8x32xf32>, vector<8x32xf32> -> vector<8x96xf32>
    %cst_11 = arith.constant 0.000000e+00 : f32
    %47 = vector.broadcast %cst_11 : f32 to vector<8x32xf32>
    %48 = tpu.concatenate %46, %47 in 1 : vector<8x96xf32>, vector<8x32xf32> -> vector<8x128xf32>
    %c0_12 = arith.constant 0 : index
    %c0_13 = arith.constant 0 : index
    %49 = vector.load %arg5[%c0_12, %c0_13] : memref<8x128xf32, #tpu.memory_space<vmem>>, vector<8x128xf32>
    tpu.vector_store %arg5[%c0_12, %c0_13], %48 {strides = array<i32>} : memref<8x128xf32, #tpu.memory_space<vmem>>, vector<8x128xf32>,
    return
  }
  func.func @transform_0(%arg0: i32) -> (i32, i32) {
    %c0_i32 = arith.constant 0 : i32
    %c0_i32_0 = arith.constant 0 : i32
    return %arg0, %c0_i32 : i32, i32
  }
  func.func @transform_1(%arg0: i32) -> (i32, i32) {
    %c0_i32 = arith.constant 0 : i32
    %c0_i32_0 = arith.constant 0 : i32
    return %arg0, %c0_i32 : i32, i32
  }
  func.func @transform_2(%arg0: i32) -> (i32, i32) {
    %c0_i32 = arith.constant 0 : i32
    %c0_i32_0 = arith.constant 0 : i32
    %c0_i32_1 = arith.constant 0 : i32
    return %c0_i32, %c0_i32_0 : i32, i32
  }
  func.func @transform_3(%arg0: i32) -> (i32, i32) {
    %c0_i32 = arith.constant 0 : i32
    %c0_i32_0 = arith.constant 0 : i32
    %c0_i32_1 = arith.constant 0 : i32
    return %c0_i32, %c0_i32_0 : i32, i32
  }
  func.func @transform_4(%arg0: i32) -> (i32, i32) {
    %c0_i32 = arith.constant 0 : i32
    %c0_i32_0 = arith.constant 0 : i32
    return %arg0, %c0_i32 : i32, i32
  }
}

module attributes {stable_mosaic.version = 11 : i64} {
  func.func @_cgc_kernel(%arg0: i32, %arg1: memref<8x16xf32, #tpu.memory_space<vmem>>, %arg2: memref<8x16xf32, #tpu.memory_space<vmem>>, %arg3: memref<32x134xf32, #tpu.memory_space<vmem>>, %arg4: memref<1x128xf32, #tpu.memory_space<vmem>>, %arg5: memref<8x128xf32, #tpu.memory_space<vmem>>) attributes {dimension_semantics = [#tpu.dimension_semantics<parallel>], iteration_bounds = array<i64: 1>, scalar_prefetch = 0 : i64, scratch_operands = 0 : i64, tpu.core_type = #tpu.core_type<tc>, window_params = [{transform_indices = @transform_0, window_bounds = array<i64: 8, 16>}, {transform_indices = @transform_1, window_bounds = array<i64: 8, 16>}, {pipeline_mode = #tpu.pipeline_mode<synchronous>, transform_indices = @transform_2, window_bounds = array<i64: 32, 134>}, {pipeline_mode = #tpu.pipeline_mode<synchronous>, transform_indices = @transform_3, window_bounds = array<i64: 1, 128>}, {transform_indices = @transform_4, window_bounds = array<i64: 8, 128>}]} {
    %c0 = arith.constant 0 : index
    %c0_0 = arith.constant 0 : index
    %0 = vector.load %arg1[%c0, %c0_0] : memref<8x16xf32, #tpu.memory_space<vmem>>, vector<8x16xf32>
    %c0_1 = arith.constant 0 : index
    %c0_2 = arith.constant 0 : index
    %1 = vector.load %arg2[%c0_1, %c0_2] : memref<8x16xf32, #tpu.memory_space<vmem>>, vector<8x16xf32>
    %2 = tpu.concatenate %0, %1 in 1 : vector<8x16xf32>, vector<8x16xf32> -> vector<8x32xf32>
    %c0_3 = arith.constant 0 : index
    %c0_4 = arith.constant 0 : index
    %3 = vector.load %arg3[%c0_3, %c0_4] : memref<32x134xf32, #tpu.memory_space<vmem>>, vector<32x134xf32>
    %cst = arith.constant dense<0.000000e+00> : vector<8x134xf32>
    %4 = tpu.matmul %2, %3, %cst {dimension_numbers = #tpu.dot_dimension_numbers<[1], [0], [0], [1], [0, 0, 1, 1], [], []>} : vector<8x32xf32>, vector<32x134xf32>, vector<8x134xf32> -> vector<8x134xf32>
    %5 = vector.extract_strided_slice %4 {offsets = [0, 0], sizes = [8, 128], strides = [1, 1]} : vector<8x134xf32> to vector<8x128xf32>
    %c0_5 = arith.constant 0 : index
    %c0_6 = arith.constant 0 : index
    %6 = vector.load %arg4[%c0_5, %c0_6] : memref<1x128xf32, #tpu.memory_space<vmem>>, vector<1x128xf32>
    %7 = vector.broadcast %6 : vector<1x128xf32> to vector<8x128xf32>
    %8 = arith.addf %5, %7 : vector<8x128xf32>
    %cst_7 = arith.constant 0.000000e+00 : f32
    %9 = vector.broadcast %cst_7 : f32 to vector<8x128xf32>
    %10 = arith.maximumf %8, %9 : vector<8x128xf32>
    %11 = vector.extract_strided_slice %4 {offsets = [0, 128], sizes = [8, 3], strides = [1, 1]} : vector<8x134xf32> to vector<8x3xf32>
    %12 = vector.extract_strided_slice %4 {offsets = [0, 131], sizes = [8, 3], strides = [1, 1]} : vector<8x134xf32> to vector<8x3xf32>
    %13 = arith.subf %11, %12 : vector<8x3xf32>
    %14 = math.exp %13 : vector<8x3xf32>
    %cst_8 = arith.constant 1.000000e+00 : f32
    %15 = vector.broadcast %cst_8 : f32 to vector<8x3xf32>
    %16 = arith.addf %15, %14 : vector<8x3xf32>
    %cst_9 = arith.constant 1.000000e+00 : f32
    %17 = vector.broadcast %cst_9 : f32 to vector<8x3xf32>
    %18 = arith.divf %17, %16 : vector<8x3xf32>
    %cst_10 = arith.constant 1.000000e+00 : f32
    %19 = vector.broadcast %cst_10 : f32 to vector<8x3xf32>
    %20 = arith.subf %19, %18 : vector<8x3xf32>
    %21 = vector.extract_strided_slice %10 {offsets = [0, 0], sizes = [8, 32], strides = [1, 1]} : vector<8x128xf32> to vector<8x32xf32>
    %22 = vector.extract_strided_slice %20 {offsets = [0, 0], sizes = [8, 1], strides = [1, 1]} : vector<8x3xf32> to vector<8x1xf32>
    %23 = vector.broadcast %22 : vector<8x1xf32> to vector<8x32xf32>
    %24 = arith.mulf %23, %21 : vector<8x32xf32>
    %25 = vector.extract_strided_slice %18 {offsets = [0, 0], sizes = [8, 1], strides = [1, 1]} : vector<8x3xf32> to vector<8x1xf32>
    %26 = vector.extract_strided_slice %10 {offsets = [0, 32], sizes = [8, 32], strides = [1, 1]} : vector<8x128xf32> to vector<8x32xf32>
    %27 = vector.broadcast %25 : vector<8x1xf32> to vector<8x32xf32>
    %28 = arith.mulf %27, %26 : vector<8x32xf32>
    %29 = arith.addf %24, %28 : vector<8x32xf32>
    %30 = vector.extract_strided_slice %20 {offsets = [0, 1], sizes = [8, 1], strides = [1, 1]} : vector<8x3xf32> to vector<8x1xf32>
    %31 = vector.broadcast %30 : vector<8x1xf32> to vector<8x32xf32>
    %32 = arith.mulf %31, %21 : vector<8x32xf32>
    %33 = vector.extract_strided_slice %18 {offsets = [0, 1], sizes = [8, 1], strides = [1, 1]} : vector<8x3xf32> to vector<8x1xf32>
    %34 = vector.extract_strided_slice %10 {offsets = [0, 64], sizes = [8, 32], strides = [1, 1]} : vector<8x128xf32> to vector<8x32xf32>
    %35 = vector.broadcast %33 : vector<8x1xf32> to vector<8x32xf32>
    %36 = arith.mulf %35, %34 : vector<8x32xf32>
    %37 = arith.addf %32, %36 : vector<8x32xf32>
    %38 = vector.extract_strided_slice %20 {offsets = [0, 2], sizes = [8, 1], strides = [1, 1]} : vector<8x3xf32> to vector<8x1xf32>
    %39 = vector.broadcast %38 : vector<8x1xf32> to vector<8x32xf32>
    %40 = arith.mulf %39, %21 : vector<8x32xf32>
    %41 = vector.extract_strided_slice %18 {offsets = [0, 2], sizes = [8, 1], strides = [1, 1]} : vector<8x3xf32> to vector<8x1xf32>
    %42 = vector.extract_strided_slice %10 {offsets = [0, 96], sizes = [8, 32], strides = [1, 1]} : vector<8x128xf32> to vector<8x32xf32>
    %43 = vector.broadcast %41 : vector<8x1xf32> to vector<8x32xf32>
    %44 = arith.mulf %43, %42 : vector<8x32xf32>
    %45 = arith.addf %40, %44 : vector<8x32xf32>
    %46 = tpu.concatenate %29, %37, %45 in 1 : vector<8x32xf32>, vector<8x32xf32>, vector<8x32xf32> -> vector<8x96xf32>
    %cst_11 = arith.constant 0.000000e+00 : f32
    %47 = vector.broadcast %cst_11 : f32 to vector<8x32xf32>
    %48 = tpu.concatenate %46, %47 in 1 : vector<8x96xf32>, vector<8x32xf32> -> vector<8x128xf32>
    %c0_12 = arith.constant 0 : index
    %c0_13 = arith.constant 0 : index
    %49 = vector.load %arg5[%c0_12, %c0_13] : memref<8x128xf32, #tpu.memory_space<vmem>>, vector<8x128xf32>
    tpu.vector_store %arg5[%c0_12, %c0_13], %48 {strides = array<i32>} : memref<8x128xf32, #tpu.memory_space<vmem>>, vector<8x128xf32>,
    return
  }
  func.func @transform_0(%arg0: i32) -> (i32, i32) {
    %c0_i32 = arith.constant 0 : i32
    %c0_i32_0 = arith.constant 0 : i32
    return %arg0, %c0_i32 : i32, i32
  }
  func.func @transform_1(%arg0: i32) -> (i32, i32) {
    %c0_i32 = arith.constant 0 : i32
    %c0_i32_0 = arith.constant 0 : i32
    return %arg0, %c0_i32 : i32, i32
  }
  func.func @transform_2(%arg0: i32) -> (i32, i32) {
    %c0_i32 = arith.constant 0 : i32
    %c0_i32_0 = arith.constant 0 : i32
    %c0_i32_1 = arith.constant 0 : i32
    return %c0_i32, %c0_i32_0 : i32, i32
  }
  func.func @transform_3(%arg0: i32) -> (i32, i32) {
    %c0_i32 = arith.constant 0 : i32
    %c0_i32_0 = arith.constant 0 : i32
    %c0_i32_1 = arith.constant 0 : i32
    return %c0_i32, %c0_i32_0 : i32, i32
  }
  func.func @transform_4(%arg0: i32) -> (i32, i32) {
    %c0_i32 = arith.constant 0 : i32
    %c0_i32_0 = arith.constant 0 : i32
    return %arg0, %c0_i32 : i32, i32
  }
}

</mosaic_0001>

<llo_original>
// kernel: tpu_custom_call.1
$region0: #{tpu_custom_call.1}
  #allocation0 [shape = 'u32[]', space=smem, size = 0x4, offset = 0x4, fixed_abs, tag = 'smem constant byte address 0x4 - core index']
  #allocation1 [shape = 'u32[144,128]{1,0:T(1,128)}', space=vmem, size = 0x12000, scoped, tag = 'internal scratch']
  %s0 = inlined_call_operand.hbm [shape: f32[8,16], index: 0, kind: input, shape index: {}]
  %s1 = inlined_call_operand.hbm [shape: f32[8,16], index: 1, kind: input, shape index: {}]
  %s2 = inlined_call_operand.hbm [shape: f32[32,134], index: 2, kind: input, shape index: {}]
  %s3 = inlined_call_operand.vmem [shape: f32[1,128], index: 3, kind: input, shape index: {}]
  %s4 = inlined_call_operand.hbm [shape: f32[8,128], index: 4, kind: output, shape index: {}]
  %s5 = sld [smem:[#allocation0]]
  $region38: #{tpu_custom_call.1} parent=0
    _
  %s7 = ssub.s32 1, %s5
  %s8 = scalar_select 0, %s7, %s5
  $region1: #{tpu_custom_call.1} parent=0
    #allocation2 [shape = 'u8[4096]{0}', space=vmem, size = 0x1000, scoped, tag = 'input window, operand 0, single buffered']
    #allocation3 [shape = 's32[1]{0}', space=sflag, size = 0x4, scoped, tag = 'scoped memory for tpu_custom_call.1']
    #allocation4 [shape = 's32[1]{0}', space=sflag, size = 0x4, scoped, tag = 'scoped memory for tpu_custom_call.1']
    #allocation5 [shape = 'u8[4096]{0}', space=vmem, size = 0x1000, scoped, tag = 'input window, operand 1, single buffered']
    #allocation6 [shape = 's32[1]{0}', space=sflag, size = 0x4, scoped, tag = 'scoped memory for tpu_custom_call.1']
    #allocation7 [shape = 'u8[32768]{0}', space=vmem, size = 0x8000, scoped, tag = 'input window, operand 2, single buffered']
    #allocation8 [shape = 'u8[4096]{0}', space=vmem, size = 0x1000, scoped, tag = 'output window, operand 0, single buffered']
    %9 = vsyncpa [#allocation3], 0
    %10 = vsyncpa [#allocation6], 0
    %11 = vsyncpa [#allocation4], 0
    // Predicated region
    $region2: #{tpu_custom_call.1} parent=1 // pred_check
      _
    $region3: #{tpu_custom_call.1} parent=1 // pred_check_branch
      %13 = sbr.rel (0) target = $region5
    $region4: #{tpu_custom_call.1} parent=1 // pred_region
      %s15 = ssub.s32 128, 128
      %16 = vsyncadd [#allocation3], %s15
      %s18 = sshll.u32 [#allocation2], 4
      %s19 = int_to_ptr.vmem [resolvable:$true] %s18
      %21 = dma.hbm_to_vmem [thread:$0]  %s0, 128, %s19, [#allocation3]
    $region5: #{tpu_custom_call.1} parent=1 // pred_fallthru
      _
    // Predicated region
    $region6: #{tpu_custom_call.1} parent=1 // pred_check
      _
    $region7: #{tpu_custom_call.1} parent=1 // pred_check_branch
      %23 = sbr.rel (0) target = $region9
    $region8: #{tpu_custom_call.1} parent=1 // pred_region
      %s25 = ssub.s32 128, 128
      %26 = vsyncadd [#allocation6], %s25
      %s28 = sshll.u32 [#allocation5], 4
      %s29 = int_to_ptr.vmem [resolvable:$true] %s28
      %31 = dma.hbm_to_vmem [thread:$0]  %s1, 128, %s29, [#allocation6]
    $region9: #{tpu_custom_call.1} parent=1 // pred_fallthru
      _
    // Predicated region
    $region10: #{tpu_custom_call.1} parent=1 // pred_check
      _
    $region11: #{tpu_custom_call.1} parent=1 // pred_check_branch
      %33 = sbr.rel (0) target = $region13
    $region12: #{tpu_custom_call.1} parent=1 // pred_region
      %s35 = ssub.s32 1024, 1024
      %36 = vsyncadd [#allocation6], %s35
      %s37 = sshll.u32 [#allocation7], 4
      %s38 = int_to_ptr.vmem [resolvable:$true] %s37
      %43 = dma.hbm_to_vmem [thread:$0]  %s2, 1024, %s38, [#allocation6], 256, 256, 16
    $region13: #{tpu_custom_call.1} parent=1 // pred_fallthru
      _
    // Predicated region
    $region14: #{tpu_custom_call.1} parent=1 // pred_check
      _
    $region15: #{tpu_custom_call.1} parent=1 // pred_check_branch
      %45 = sbr.rel (0) target = $region17
    $region16: #{tpu_custom_call.1} parent=1 // pred_region
      _
    $region17: #{tpu_custom_call.1} parent=1 // pred_fallthru
      _
    // Predicated region
    $region18: #{tpu_custom_call.1} parent=1 // pred_check
      _
    $region19: #{tpu_custom_call.1} parent=1 // pred_check_branch
      %47 = sbr.rel (0) target = $region21
    $region20: #{tpu_custom_call.1} parent=1 // pred_region
      %48 = dma.done [#allocation3], 128
    $region21: #{tpu_custom_call.1} parent=1 // pred_fallthru
      _
    // Predicated region
    $region22: #{tpu_custom_call.1} parent=1 // pred_check
      _
    $region23: #{tpu_custom_call.1} parent=1 // pred_check_branch
      %50 = sbr.rel (0) target = $region25
    $region24: #{tpu_custom_call.1} parent=1 // pred_region
      %51 = dma.done [#allocation6], 128
    $region25: #{tpu_custom_call.1} parent=1 // pred_fallthru
      _
    // Predicated region
    $region26: #{tpu_custom_call.1} parent=1 // pred_check
      _
    $region27: #{tpu_custom_call.1} parent=1 // pred_check_branch
      %53 = sbr.rel (0) target = $region29
    $region28: #{tpu_custom_call.1} parent=1 // pred_region
      %54 = dma.done [#allocation6], 1024
    $region29: #{tpu_custom_call.1} parent=1 // pred_fallthru
      _
    %v55 = vld [vmem:[#allocation2] sm:$0xff]
    %v56 = vld [vmem:[#allocation5] sm:$0xff]
    %58 = vrot.lane.b32.xlu0 %v56, 16
    %v59 = vpop.permute.xlu0 %58
    %vm61 = vcmask 130048
    %v62 = vsel %vm61, %v55, %v59
    %v63 = vld [vmem:[#allocation7] sm:$0xff]
    %v64 = vld [vmem:[#allocation7 + $0x8] sm:$0xff]
    %v65 = vld [vmem:[#allocation7 + $0x10] sm:$0xff]
    %v66 = vld [vmem:[#allocation7 + $0x18] sm:$0xff]
    %v67 = vld [vmem:[#allocation7 + $0x20] sm:$0xff]
    %v68 = vld [vmem:[#allocation7 + $0x28] sm:$0xff]
    %v69 = vld [vmem:[#allocation7 + $0x30] sm:$0xff]
    %v70 = vld [vmem:[#allocation7 + $0x38] sm:$0xff]
    %vm71 = vcmask 261120
    %v73 = vsel %vm71, %v62, 0
    %75 = vmatprep.subr.mxu0 %v64
    %76 = vmatpush1.msra.mxu0 %v63
    %77 = vmatprep.subr.mxu0 %v66
    %78 = vmatpush1.msra.mxu0 %v65
    %79 = vmatprep.subr.mxu0 %v68
    %80 = vmatpush1.msra.mxu0 %v67
    %81 = vmatprep.subr.mxu0 %v70
    %82 = vmatpush1.msra.mxu0 %v69
    %83 = vmatprep.subr.mxu0 0.0
    %84 = vmatpush1.msra.mxu0 0.0
    %85 = vmatprep.subr.mxu0 0.0
    %86 = vmatpush1.msra.mxu0 0.0
    %87 = vmatprep.subr.mxu0 0.0
    %88 = vmatpush1.msra.mxu0 0.0
    %89 = vmatprep.subr.mxu0 0.0
    %90 = vmatpush1.msra.mxu0 0.0
    %91 = vmatprep.subr.mxu0 0.0
    %92 = vmatpush1.msra.mxu0 0.0
    %93 = vmatprep.subr.mxu0 0.0
    %94 = vmatpush1.msra.mxu0 0.0
    %95 = vmatprep.subr.mxu0 0.0
    %96 = vmatpush1.msra.mxu0 0.0
    %97 = vmatprep.subr.mxu0 0.0
    %98 = vmatpush1.msra.mxu0 0.0
    %99 = vmatprep.subr.mxu0 0.0
    %100 = vmatpush1.msra.mxu0 0.0
    %101 = vmatprep.subr.mxu0 0.0
    %102 = vmatpush1.msra.mxu0 0.0
    %103 = vmatprep.subr.mxu0 0.0
    %104 = vmatpush1.msra.mxu0 0.0
    %105 = vmatprep.subr.mxu0 0.0
    %106 = vmatpush1.msra.mxu0 0.0
    %107 = vmatprep.subr.mxu0 0.0
    %108 = vmatpush1.msra.mxu0 0.0
    %109 = vmatprep.subr.mxu0 0.0
    %110 = vmatpush1.msra.mxu0 0.0
    %111 = vmatprep.subr.mxu0 0.0
    %112 = vmatpush1.msra.mxu0 0.0
    %113 = vmatprep.subr.mxu0 0.0
    %114 = vmatpush1.msra.mxu0 0.0
    %115 = vmatprep.subr.mxu0 0.0
    %116 = vmatpush1.msra.mxu0 0.0
    %117 = vmatprep.subr.mxu0 0.0
    %118 = vmatpush1.msra.mxu0 0.0
    %119 = vmatprep.subr.mxu0 0.0
    %120 = vmatpush1.msra.mxu0 0.0
    %121 = vmatprep.subr.mxu0 0.0
    %122 = vmatpush1.msra.mxu0 0.0
    %123 = vmatprep.subr.mxu0 0.0
    %124 = vmatpush1.msra.mxu0 0.0
    %125 = vmatprep.subr.mxu0 0.0
    %126 = vmatpush1.msra.mxu0 0.0
    %127 = vmatprep.subr.mxu0 0.0
    %128 = vmatpush1.msra.mxu0 0.0
    %129 = vmatprep.subr.mxu0 0.0
    %130 = vmatpush1.msra.mxu0 0.0
    %131 = vmatprep.subr.mxu0 0.0
    %132 = vmatpush1.msra.mxu0 0.0
    %133 = vmatprep.subr.mxu0 0.0
    %134 = vmatpush1.msra.mxu0 0.0
    %135 = vmatprep.subr.mxu0 0.0
    %136 = vmatpush1.msra.mxu0 0.0
    %137 = vmatprep.subr.mxu0 0.0
    %138 = vmatpush1.msra.mxu0 0.0
    %139 = vmatprep.mubr.f32.mxu0 0.0
    %140 = vmatmul.mubr.f32.gmra.mrb[0].mxu0 %v73
    %v141 = vpop.f32.mrb[0].mxu0
    %v142 = vadd.f32 0.0, %v141
    %v143 = vpop.f32.mrb[0].mxu0
    %v144 = vadd.f32 0.0, %v143
    %145 = vdwg.mxu0
    %v146 = vld [vmem:[%s3] sm:$0x1]
    %v148 = vlaneseq
    %v149 = vshrl.u32 %v148, 7
    %v150 = vsub.s32 0, %v149
    %v151 = vrot.slane %v146, %v150
    %v153 = vadd.f32 %v142, %v151
    %v154 = vmax.f32 %v153, 0.0
    %156 = vrot.lane.b32.xlu0 %v144, 125
    %v157 = vpop.permute.xlu0 %156
    %v159 = vsub.f32 %v144, %v157
    %v160 = vmul.f32 %v159, 1.442695
    %v161 = vpow.pop %v160
    %v162 = vadd.f32 %v161, 1.0
    %v163 = vrcp.pop %v162
    %v164 = vmul.f32 1.0, %v163
    %v165 = vsub.f32 1.0, %v164
    %167 = vset.pattern.permute.xlu0 0
    %168 = vperm.xlu0 %167, %v165
    %v169 = vpop.permute.xlu0 %168
    %v171 = vmul.f32 %v169, %v154
    %173 = vset.pattern.permute.xlu0 0
    %174 = vperm.xlu0 %173, %v164
    %v175 = vpop.permute.xlu0 %174
    %v177 = vmul.f32 %v175, %v154
    %179 = vrot.lane.b32.xlu0 %v177, 96
    %v180 = vpop.permute.xlu0 %179
    %v182 = vadd.f32 %v171, %v180
    %183 = vset.pattern.permute.xlu0 1
    %184 = vperm.xlu0 %183, %v165
    %v185 = vpop.permute.xlu0 %184
    %v187 = vmul.f32 %v185, %v154
    %188 = vset.pattern.permute.xlu0 1
    %189 = vperm.xlu0 %188, %v164
    %v190 = vpop.permute.xlu0 %189
    %v192 = vmul.f32 %v190, %v154
    %194 = vrot.lane.b32.xlu0 %v192, 64
    %v195 = vpop.permute.xlu0 %194
    %v197 = vadd.f32 %v187, %v195
    %198 = vset.pattern.permute.xlu0 2
    %199 = vperm.xlu0 %198, %v165
    %v200 = vpop.permute.xlu0 %199
    %v202 = vmul.f32 %v200, %v154
    %203 = vset.pattern.permute.xlu0 2
    %204 = vperm.xlu0 %203, %v164
    %v205 = vpop.permute.xlu0 %204
    %v207 = vmul.f32 %v205, %v154
    %209 = vrot.lane.b32.xlu0 %v207, 32
    %v210 = vpop.permute.xlu0 %209
    %v212 = vadd.f32 %v202, %v210
    %214 = vrot.lane.b32.xlu0 %v197, 32
    %v215 = vpop.permute.xlu0 %214
    %218 = vrot.lane.b32.xlu0 %v212, 64
    %v219 = vpop.permute.xlu0 %218
    %v221 = vsel %vm71, %v182, %v215
    %vm222 = vcmask 523264
    %v223 = vsel %vm222, %v221, %v219
    %vm224 = vcmask 785408
    %v225 = vsel %vm224, %v223, 0.0
    %226 = vst [vmem:[#allocation8] sm:$0xff] %v225
    // Predicated region
    $region30: #{tpu_custom_call.1} parent=1 // pred_check
      _
    $region31: #{tpu_custom_call.1} parent=1 // pred_check_branch
      %228 = sbr.rel (0) target = $region33
    $region32: #{tpu_custom_call.1} parent=1 // pred_region
      %s230 = ssub.s32 128, 128
      %231 = vsyncadd [#allocation4], %s230
      %s233 = sshll.u32 [#allocation8], 4
      %s234 = int_to_ptr.vmem [resolvable:$true] %s233
      %236 = dma.vmem_to_hbm [thread:$0]  %s234, 128, %s4, [#allocation4]
    $region33: #{tpu_custom_call.1} parent=1 // pred_fallthru
      _
    // Predicated region
    $region34: #{tpu_custom_call.1} parent=1 // pred_check
      _
    $region35: #{tpu_custom_call.1} parent=1 // pred_check_branch
      %238 = sbr.rel (0) target = $region37
    $region36: #{tpu_custom_call.1} parent=1 // pred_region
      %239 = dma.done [#allocation4], 128
    $region37: #{tpu_custom_call.1} parent=1 // pred_fallthru
      _
    %240 = vsyncpa [#allocation3], 1
    %241 = vsyncpa [#allocation6], 1
    %242 = vsyncpa [#allocation4], 1

// kernel: tpu_custom_call.1
$region0: #{tpu_custom_call.1}
  #allocation0 [shape = 'u32[]', space=smem, size = 0x4, offset = 0x4, fixed_abs, tag = 'smem constant byte address 0x4 - core index']
  #allocation1 [shape = 'u32[144,128]{1,0:T(1,128)}', space=vmem, size = 0x12000, scoped, tag = 'internal scratch']
  %s0 = inlined_call_operand.hbm [shape: f32[8,16], index: 0, kind: input, shape index: {}]
  %s1 = inlined_call_operand.hbm [shape: f32[8,16], index: 1, kind: input, shape index: {}]
  %s2 = inlined_call_operand.hbm [shape: f32[32,134], index: 2, kind: input, shape index: {}]
  %s3 = inlined_call_operand.vmem [shape: f32[1,128], index: 3, kind: input, shape index: {}]
  %s4 = inlined_call_operand.hbm [shape: f32[8,128], index: 4, kind: output, shape index: {}]
  %s5 = sld [smem:[#allocation0]]
  $region38: #{tpu_custom_call.1} parent=0
    _
  %s7 = ssub.s32 1, %s5
  %s8 = scalar_select 0, %s7, %s5
  $region1: #{tpu_custom_call.1} parent=0
    #allocation2 [shape = 'u8[4096]{0}', space=vmem, size = 0x1000, scoped, tag = 'input window, operand 0, single buffered']
    #allocation3 [shape = 's32[1]{0}', space=sflag, size = 0x4, scoped, tag = 'scoped memory for tpu_custom_call.1']
    #allocation4 [shape = 's32[1]{0}', space=sflag, size = 0x4, scoped, tag = 'scoped memory for tpu_custom_call.1']
    #allocation5 [shape = 'u8[4096]{0}', space=vmem, size = 0x1000, scoped, tag = 'input window, operand 1, single buffered']
    #allocation6 [shape = 's32[1]{0}', space=sflag, size = 0x4, scoped, tag = 'scoped memory for tpu_custom_call.1']
    #allocation7 [shape = 'u8[32768]{0}', space=vmem, size = 0x8000, scoped, tag = 'input window, operand 2, single buffered']
    #allocation8 [shape = 'u8[4096]{0}', space=vmem, size = 0x1000, scoped, tag = 'output window, operand 0, single buffered']
    %9 = vsyncpa [#allocation3], 0
    %10 = vsyncpa [#allocation6], 0
    %11 = vsyncpa [#allocation4], 0
    // Predicated region
    $region2: #{tpu_custom_call.1} parent=1 // pred_check
      _
    $region3: #{tpu_custom_call.1} parent=1 // pred_check_branch
      %13 = sbr.rel (0) target = $region5
    $region4: #{tpu_custom_call.1} parent=1 // pred_region
      %s15 = ssub.s32 128, 128
      %16 = vsyncadd [#allocation3], %s15
      %s18 = sshll.u32 [#allocation2], 4
      %s19 = int_to_ptr.vmem [resolvable:$true] %s18
      %21 = dma.hbm_to_vmem [thread:$0]  %s0, 128, %s19, [#allocation3]
    $region5: #{tpu_custom_call.1} parent=1 // pred_fallthru
      _
    // Predicated region
    $region6: #{tpu_custom_call.1} parent=1 // pred_check
      _
    $region7: #{tpu_custom_call.1} parent=1 // pred_check_branch
      %23 = sbr.rel (0) target = $region9
    $region8: #{tpu_custom_call.1} parent=1 // pred_region
      %s25 = ssub.s32 128, 128
      %26 = vsyncadd [#allocation6], %s25
      %s28 = sshll.u32 [#allocation5], 4
      %s29 = int_to_ptr.vmem [resolvable:$true] %s28
      %31 = dma.hbm_to_vmem [thread:$0]  %s1, 128, %s29, [#allocation6]
    $region9: #{tpu_custom_call.1} parent=1 // pred_fallthru
      _
    // Predicated region
    $region10: #{tpu_custom_call.1} parent=1 // pred_check
      _
    $region11: #{tpu_custom_call.1} parent=1 // pred_check_branch
      %33 = sbr.rel (0) target = $region13
    $region12: #{tpu_custom_call.1} parent=1 // pred_region
      %s35 = ssub.s32 1024, 1024
      %36 = vsyncadd [#allocation6], %s35
      %s37 = sshll.u32 [#allocation7], 4
      %s38 = int_to_ptr.vmem [resolvable:$true] %s37
      %43 = dma.hbm_to_vmem [thread:$0]  %s2, 1024, %s38, [#allocation6], 256, 256, 16
    $region13: #{tpu_custom_call.1} parent=1 // pred_fallthru
      _
    // Predicated region
    $region14: #{tpu_custom_call.1} parent=1 // pred_check
      _
    $region15: #{tpu_custom_call.1} parent=1 // pred_check_branch
      %45 = sbr.rel (0) target = $region17
    $region16: #{tpu_custom_call.1} parent=1 // pred_region
      _
    $region17: #{tpu_custom_call.1} parent=1 // pred_fallthru
      _
    // Predicated region
    $region18: #{tpu_custom_call.1} parent=1 // pred_check
      _
    $region19: #{tpu_custom_call.1} parent=1 // pred_check_branch
      %47 = sbr.rel (0) target = $region21
    $region20: #{tpu_custom_call.1} parent=1 // pred_region
      %48 = dma.done [#allocation3], 128
    $region21: #{tpu_custom_call.1} parent=1 // pred_fallthru
      _
    // Predicated region
    $region22: #{tpu_custom_call.1} parent=1 // pred_check
      _
    $region23: #{tpu_custom_call.1} parent=1 // pred_check_branch
      %50 = sbr.rel (0) target = $region25
    $region24: #{tpu_custom_call.1} parent=1 // pred_region
      %51 = dma.done [#allocation6], 128
    $region25: #{tpu_custom_call.1} parent=1 // pred_fallthru
      _
    // Predicated region
    $region26: #{tpu_custom_call.1} parent=1 // pred_check
      _
    $region27: #{tpu_custom_call.1} parent=1 // pred_check_branch
      %53 = sbr.rel (0) target = $region29
    $region28: #{tpu_custom_call.1} parent=1 // pred_region
      %54 = dma.done [#allocation6], 1024
    $region29: #{tpu_custom_call.1} parent=1 // pred_fallthru
      _
    %v55 = vld [vmem:[#allocation2] sm:$0xff]
    %v56 = vld [vmem:[#allocation5] sm:$0xff]
    %58 = vrot.lane.b32.xlu0 %v56, 16
    %v59 = vpop.permute.xlu0 %58
    %vm61 = vcmask 130048
    %v62 = vsel %vm61, %v55, %v59
    %v63 = vld [vmem:[#allocation7] sm:$0xff]
    %v64 = vld [vmem:[#allocation7 + $0x8] sm:$0xff]
    %v65 = vld [vmem:[#allocation7 + $0x10] sm:$0xff]
    %v66 = vld [vmem:[#allocation7 + $0x18] sm:$0xff]
    %v67 = vld [vmem:[#allocation7 + $0x20] sm:$0xff]
    %v68 = vld [vmem:[#allocation7 + $0x28] sm:$0xff]
    %v69 = vld [vmem:[#allocation7 + $0x30] sm:$0xff]
    %v70 = vld [vmem:[#allocation7 + $0x38] sm:$0xff]
    %vm71 = vcmask 261120
    %v73 = vsel %vm71, %v62, 0
    %75 = vmatprep.subr.mxu0 %v64
    %76 = vmatpush1.msra.mxu0 %v63
    %77 = vmatprep.subr.mxu0 %v66
    %78 = vmatpush1.msra.mxu0 %v65
    %79 = vmatprep.subr.mxu0 %v68
    %80 = vmatpush1.msra.mxu0 %v67
    %81 = vmatprep.subr.mxu0 %v70
    %82 = vmatpush1.msra.mxu0 %v69
    %83 = vmatprep.subr.mxu0 0.0
    %84 = vmatpush1.msra.mxu0 0.0
    %85 = vmatprep.subr.mxu0 0.0
    %86 = vmatpush1.msra.mxu0 0.0
    %87 = vmatprep.subr.mxu0 0.0
    %88 = vmatpush1.msra.mxu0 0.0
    %89 = vmatprep.subr.mxu0 0.0
    %90 = vmatpush1.msra.mxu0 0.0
    %91 = vmatprep.subr.mxu0 0.0
    %92 = vmatpush1.msra.mxu0 0.0
    %93 = vmatprep.subr.mxu0 0.0
    %94 = vmatpush1.msra.mxu0 0.0
    %95 = vmatprep.subr.mxu0 0.0
    %96 = vmatpush1.msra.mxu0 0.0
    %97 = vmatprep.subr.mxu0 0.0
    %98 = vmatpush1.msra.mxu0 0.0
    %99 = vmatprep.subr.mxu0 0.0
    %100 = vmatpush1.msra.mxu0 0.0
    %101 = vmatprep.subr.mxu0 0.0
    %102 = vmatpush1.msra.mxu0 0.0
    %103 = vmatprep.subr.mxu0 0.0
    %104 = vmatpush1.msra.mxu0 0.0
    %105 = vmatprep.subr.mxu0 0.0
    %106 = vmatpush1.msra.mxu0 0.0
    %107 = vmatprep.subr.mxu0 0.0
    %108 = vmatpush1.msra.mxu0 0.0
    %109 = vmatprep.subr.mxu0 0.0
    %110 = vmatpush1.msra.mxu0 0.0
    %111 = vmatprep.subr.mxu0 0.0
    %112 = vmatpush1.msra.mxu0 0.0
    %113 = vmatprep.subr.mxu0 0.0
    %114 = vmatpush1.msra.mxu0 0.0
    %115 = vmatprep.subr.mxu0 0.0
    %116 = vmatpush1.msra.mxu0 0.0
    %117 = vmatprep.subr.mxu0 0.0
    %118 = vmatpush1.msra.mxu0 0.0
    %119 = vmatprep.subr.mxu0 0.0
    %120 = vmatpush1.msra.mxu0 0.0
    %121 = vmatprep.subr.mxu0 0.0
    %122 = vmatpush1.msra.mxu0 0.0
    %123 = vmatprep.subr.mxu0 0.0
    %124 = vmatpush1.msra.mxu0 0.0
    %125 = vmatprep.subr.mxu0 0.0
    %126 = vmatpush1.msra.mxu0 0.0
    %127 = vmatprep.subr.mxu0 0.0
    %128 = vmatpush1.msra.mxu0 0.0
    %129 = vmatprep.subr.mxu0 0.0
    %130 = vmatpush1.msra.mxu0 0.0
    %131 = vmatprep.subr.mxu0 0.0
    %132 = vmatpush1.msra.mxu0 0.0
    %133 = vmatprep.subr.mxu0 0.0
    %134 = vmatpush1.msra.mxu0 0.0
    %135 = vmatprep.subr.mxu0 0.0
    %136 = vmatpush1.msra.mxu0 0.0
    %137 = vmatprep.subr.mxu0 0.0
    %138 = vmatpush1.msra.mxu0 0.0
    %139 = vmatprep.mubr.f32.mxu0 0.0
    %140 = vmatmul.mubr.f32.gmra.mrb[0].mxu0 %v73
    %v141 = vpop.f32.mrb[0].mxu0
    %v142 = vadd.f32 0.0, %v141
    %v143 = vpop.f32.mrb[0].mxu0
    %v144 = vadd.f32 0.0, %v143
    %145 = vdwg.mxu0
    %v146 = vld [vmem:[%s3] sm:$0x1]
    %v148 = vlaneseq
    %v149 = vshrl.u32 %v148, 7
    %v150 = vsub.s32 0, %v149
    %v151 = vrot.slane %v146, %v150
    %v153 = vadd.f32 %v142, %v151
    %v154 = vmax.f32 %v153, 0.0
    %156 = vrot.lane.b32.xlu0 %v144, 125
    %v157 = vpop.permute.xlu0 %156
    %v159 = vsub.f32 %v144, %v157
    %v160 = vmul.f32 %v159, 1.442695
    %v161 = vpow.pop %v160
    %v162 = vadd.f32 %v161, 1.0
    %v163 = vrcp.pop %v162
    %v164 = vmul.f32 1.0, %v163
    %v165 = vsub.f32 1.0, %v164
    %167 = vset.pattern.permute.xlu0 0
    %168 = vperm.xlu0 %167, %v165
    %v169 = vpop.permute.xlu0 %168
    %v171 = vmul.f32 %v169, %v154
    %173 = vset.pattern.permute.xlu0 0
    %174 = vperm.xlu0 %173, %v164
    %v175 = vpop.permute.xlu0 %174
    %v177 = vmul.f32 %v175, %v154
    %179 = vrot.lane.b32.xlu0 %v177, 96
    %v180 = vpop.permute.xlu0 %179
    %v182 = vadd.f32 %v171, %v180
    %183 = vset.pattern.permute.xlu0 1
    %184 = vperm.xlu0 %183, %v165
    %v185 = vpop.permute.xlu0 %184
    %v187 = vmul.f32 %v185, %v154
    %188 = vset.pattern.permute.xlu0 1
    %189 = vperm.xlu0 %188, %v164
    %v190 = vpop.permute.xlu0 %189
    %v192 = vmul.f32 %v190, %v154
    %194 = vrot.lane.b32.xlu0 %v192, 64
    %v195 = vpop.permute.xlu0 %194
    %v197 = vadd.f32 %v187, %v195
    %198 = vset.pattern.permute.xlu0 2
    %199 = vperm.xlu0 %198, %v165
    %v200 = vpop.permute.xlu0 %199
    %v202 = vmul.f32 %v200, %v154
    %203 = vset.pattern.permute.xlu0 2
    %204 = vperm.xlu0 %203, %v164
    %v205 = vpop.permute.xlu0 %204
    %v207 = vmul.f32 %v205, %v154
    %209 = vrot.lane.b32.xlu0 %v207, 32
    %v210 = vpop.permute.xlu0 %209
    %v212 = vadd.f32 %v202, %v210
    %214 = vrot.lane.b32.xlu0 %v197, 32
    %v215 = vpop.permute.xlu0 %214
    %218 = vrot.lane.b32.xlu0 %v212, 64
    %v219 = vpop.permute.xlu0 %218
    %v221 = vsel %vm71, %v182, %v215
    %vm222 = vcmask 523264
    %v223 = vsel %vm222, %v221, %v219
    %vm224 = vcmask 785408
    %v225 = vsel %vm224, %v223, 0.0
    %226 = vst [vmem:[#allocation8] sm:$0xff] %v225
    // Predicated region
    $region30: #{tpu_custom_call.1} parent=1 // pred_check
      _
    $region31: #{tpu_custom_call.1} parent=1 // pred_check_branch
      %228 = sbr.rel (0) target = $region33
    $region32: #{tpu_custom_call.1} parent=1 // pred_region
      %s230 = ssub.s32 128, 128
      %231 = vsyncadd [#allocation4], %s230
      %s233 = sshll.u32 [#allocation8], 4
      %s234 = int_to_ptr.vmem [resolvable:$true] %s233
      %236 = dma.vmem_to_hbm [thread:$0]  %s234, 128, %s4, [#allocation4]
    $region33: #{tpu_custom_call.1} parent=1 // pred_fallthru
      _
    // Predicated region
    $region34: #{tpu_custom_call.1} parent=1 // pred_check
      _
    $region35: #{tpu_custom_call.1} parent=1 // pred_check_branch
      %238 = sbr.rel (0) target = $region37
    $region36: #{tpu_custom_call.1} parent=1 // pred_region
      %239 = dma.done [#allocation4], 128
    $region37: #{tpu_custom_call.1} parent=1 // pred_fallthru
      _
    %240 = vsyncpa [#allocation3], 1
    %241 = vsyncpa [#allocation6], 1
    %242 = vsyncpa [#allocation4], 1

</llo_original>
